<compile_context>
chip_gen: v7x
topology: tpu7x:2x2x1
jax: 0.10.0
libtpu: 0.0.40
codegen_flags: <defaults>
</compile_context>

<pallas_src>
import jax
import jax.numpy as jnp
from jax import lax
from jax.experimental import pallas as pl
from jax.experimental.pallas import tpu as pltpu


def _lstm_kernel(x_ref, wg_ref, waa4_ref, bg_ref, out_ref, hid_ref, xg_scr):
    # x_ref:    (T*B, E)   inputs, sequence-major, flattened over (T, B)
    # wg_ref:   (E, 4H)    fused input-projection weights [W_fx|W_ix|W_ox|W_ax]^T
    # waa4_ref: (H, 4H)    recurrent weight W_aa^T tiled 4x along outputs
    # bg_ref:   (1, 4H)    fused biases [b_f+b_a | b_i+b_a | b_o+b_a | b_a]
    # out_ref:  (T*B, H)   stacked hidden states
    # hid_ref:  (B, H)     final hidden state
    # xg_scr:   (T*B, 4H)  VMEM scratch for the hoisted input projections
    B, H = hid_ref.shape
    TB = x_ref.shape[0]
    T = TB // B

    # --- hoisted, non-recurrent part: one big lane-dense matmul -------------
    xg_scr[...] = (
        jnp.dot(x_ref[...], wg_ref[...], preferred_element_type=jnp.float32)
        + bg_ref[...]
    )

    waa4 = waa4_ref[...]  # hoist the resident weight load out of the loop

    # --- sequential recurrence (unrolled; T is small and static) ------------
    def step(t, carry):
        h, c = carry
        # (B, 4H) pre-activations: hoisted input term + single recurrent matmul
        pre = xg_scr[pl.ds(t * B, B), :] + jnp.dot(
            h, waa4, preferred_element_type=jnp.float32)
        ft = jax.nn.sigmoid(pre[:, 0:H])
        it = jax.nn.sigmoid(pre[:, H:2 * H])
        ot = jax.nn.sigmoid(pre[:, 2 * H:3 * H])
        c_pre = jnp.tanh(pre[:, 3 * H:4 * H])
        c_new = ft * c + it * c_pre
        h_new = ot * jnp.tanh(c_new)
        out_ref[pl.ds(t * B, B), :] = h_new.astype(out_ref.dtype)
        return h_new, c_new

    h0 = jnp.zeros((B, H), jnp.float32)
    c0 = jnp.zeros((B, H), jnp.float32)
    h_final, _ = lax.fori_loop(0, T, step, (h0, c0), unroll=True)

    # Final hidden written exactly once.
    hid_ref[...] = h_final.astype(hid_ref.dtype)


def text_lstm_forward(X, params):
    """X: (T, B, E) float32.  Returns (outputs (T,B,H), hidden (B,H))."""
    T, B, E = X.shape
    H = params["W_aa"].shape[0]

    # nn.Linear stores weight as (out, in) and computes x @ W.T; pre-transpose
    # and fuse the four gate projections into one (E, 4H) matrix, order [f,i,o,a].
    wg = jnp.concatenate(
        [params["W_fx"].T, params["W_ix"].T, params["W_ox"].T, params["W_ax"].T],
        axis=1)                                             # (E, 4H)
    # Recurrent weight tiled 4x so one (B,H)x(H,4H) matmul feeds all gates.
    waa_t = params["W_aa"].T                                # (H, H)
    waa4 = jnp.concatenate([waa_t, waa_t, waa_t, waa_t], axis=1)  # (H, 4H)
    # b_a is added to every gate pre-activation in the reference: fold it once
    # per gate into the fused bias vector.
    bg = jnp.concatenate(
        [params["b_f"] + params["b_a"],
         params["b_i"] + params["b_a"],
         params["b_o"] + params["b_a"],
         params["b_a"]], axis=0).reshape(1, 4 * H)          # (1, 4H)

    x2d = X.reshape(T * B, E)

    vmem = pl.BlockSpec(memory_space=pltpu.MemorySpace.VMEM)
    out2d, hidden = pl.pallas_call(
        _lstm_kernel,
        out_shape=(jax.ShapeDtypeStruct((T * B, H), jnp.float32),
                   jax.ShapeDtypeStruct((B, H), jnp.float32)),
        in_specs=[vmem, vmem, vmem, vmem],
        out_specs=(vmem, vmem),
        scratch_shapes=[pltpu.VMEM((T * B, 4 * H), jnp.float32)],
    )(x2d, wg, waa4, bg)

    return out2d.reshape(T, B, H), hidden


def text_lstm_reference(X, params):
    """Pure-JAX reference mirroring the PyTorch forward, for validation."""
    T, B, E = X.shape
    H = params["W_aa"].shape[0]
    h = jnp.zeros((B, H), jnp.float32)
    c = jnp.zeros((B, H), jnp.float32)
    outs = []
    for t in range(T):
        x = X[t]
        z = h @ params["W_aa"].T + params["b_a"]
        ft = jax.nn.sigmoid(x @ params["W_fx"].T + params["b_f"] + z)
        it = jax.nn.sigmoid(x @ params["W_ix"].T + params["b_i"] + z)
        ot = jax.nn.sigmoid(x @ params["W_ox"].T + params["b_o"] + z)
        c_pre = jnp.tanh(x @ params["W_ax"].T + z)
        c = ft * c + it * c_pre
        h = ot * jnp.tanh(c)
        outs.append(h)
    return jnp.stack(outs), h


if __name__ == "__main__":
    # Small shapes: seq=8, batch=2, emb=16, hidden=32 (n_hidden == output_size).
    T, B, E, H = 8, 2, 16, 32

    key = jax.random.PRNGKey(0)
    ks = jax.random.split(key, 7)
    params = {
        "W_ax": jax.random.normal(ks[0], (H, E), jnp.float32) * 0.1,  # (out, in)
        "W_aa": jax.random.normal(ks[1], (H, H), jnp.float32) * 0.1,
        "W_fx": jax.random.normal(ks[2], (H, E), jnp.float32) * 0.1,
        "W_ix": jax.random.normal(ks[3], (H, E), jnp.float32) * 0.1,
        "W_ox": jax.random.normal(ks[4], (H, E), jnp.float32) * 0.1,
        "b_a": jnp.ones((H,), jnp.float32),
        "b_f": jnp.ones((H,), jnp.float32),
        "b_i": jnp.ones((H,), jnp.float32),
        "b_o": jnp.ones((H,), jnp.float32),
    }
    X = jax.random.normal(ks[5], (T, B, E), jnp.float32)

    outputs, hidden = text_lstm_forward(X, params)
    outputs = jax.block_until_ready(outputs)
    hidden = jax.block_until_ready(hidden)

    ref_out, ref_hid = text_lstm_reference(X, params)
    assert outputs.shape == (T, B, H) and hidden.shape == (B, H)
    assert jnp.allclose(outputs, ref_out, atol=1e-5, rtol=1e-5)
    assert jnp.allclose(hidden, ref_hid, atol=1e-5, rtol=1e-5)

    print("KERNEL_OK")
</pallas_src>

<mosaic_0001>
module attributes {stable_mosaic.version = 11 : i64} {
  func.func @_lstm_kernel(%arg0: memref<16x16xf32, #tpu.memory_space<vmem>>, %arg1: memref<16x128xf32, #tpu.memory_space<vmem>>, %arg2: memref<32x128xf32, #tpu.memory_space<vmem>>, %arg3: memref<1x128xf32, #tpu.memory_space<vmem>>, %arg4: memref<16x32xf32, #tpu.memory_space<vmem>>, %arg5: memref<2x32xf32, #tpu.memory_space<vmem>>, %arg6: memref<16x128xf32, #tpu.memory_space<vmem>>) attributes {dimension_semantics = [], scalar_prefetch = 0 : i64, scratch_operands = 1 : i64, tpu.core_type = #tpu.core_type<tc>} {
    %c0 = arith.constant 0 : index
    %c0_0 = arith.constant 0 : index
    %0 = vector.load %arg0[%c0, %c0_0] : memref<16x16xf32, #tpu.memory_space<vmem>>, vector<16x16xf32>
    %c0_1 = arith.constant 0 : index
    %c0_2 = arith.constant 0 : index
    %1 = vector.load %arg1[%c0_1, %c0_2] : memref<16x128xf32, #tpu.memory_space<vmem>>, vector<16x128xf32>
    %cst = arith.constant dense<0.000000e+00> : vector<16x128xf32>
    %2 = tpu.matmul %0, %1, %cst {dimension_numbers = #tpu.dot_dimension_numbers<[1], [0], [0], [1], [0, 0, 1, 1], [], []>} : vector<16x16xf32>, vector<16x128xf32>, vector<16x128xf32> -> vector<16x128xf32>
    %c0_3 = arith.constant 0 : index
    %c0_4 = arith.constant 0 : index
    %3 = vector.load %arg3[%c0_3, %c0_4] : memref<1x128xf32, #tpu.memory_space<vmem>>, vector<1x128xf32>
    %4 = vector.broadcast %3 : vector<1x128xf32> to vector<16x128xf32>
    %5 = arith.addf %2, %4 : vector<16x128xf32>
    %c0_5 = arith.constant 0 : index
    %c0_6 = arith.constant 0 : index
    %6 = vector.load %arg6[%c0_5, %c0_6] : memref<16x128xf32, #tpu.memory_space<vmem>>, vector<16x128xf32>
    tpu.vector_store %arg6[%c0_5, %c0_6], %5 {strides = array<i32>} : memref<16x128xf32, #tpu.memory_space<vmem>>, vector<16x128xf32>,
    %c0_7 = arith.constant 0 : index
    %c0_8 = arith.constant 0 : index
    %7 = vector.load %arg2[%c0_7, %c0_8] : memref<32x128xf32, #tpu.memory_space<vmem>>, vector<32x128xf32>
    %cst_9 = arith.constant 0.000000e+00 : f32
    %8 = vector.broadcast %cst_9 : f32 to vector<2x32xf32>
    %cst_10 = arith.constant 0.000000e+00 : f32
    %9 = vector.broadcast %cst_10 : f32 to vector<2x32xf32>
    %c0_i32 = arith.constant 0 : i32
    %c2_i32 = arith.constant 2 : i32
    %10 = arith.muli %c0_i32, %c2_i32 : i32
    %11 = arith.index_cast %10 : i32 to index
    %c0_11 = arith.constant 0 : index
    %12 = vector.load %arg6[%11, %c0_11] : memref<16x128xf32, #tpu.memory_space<vmem>>, vector<2x128xf32>
    %cst_12 = arith.constant dense<0.000000e+00> : vector<2x128xf32>
    %13 = tpu.matmul %8, %7, %cst_12 {dimension_numbers = #tpu.dot_dimension_numbers<[1], [0], [0], [1], [0, 0, 1, 1], [], []>} : vector<2x32xf32>, vector<32x128xf32>, vector<2x128xf32> -> vector<2x128xf32>
    %14 = arith.addf %12, %13 : vector<2x128xf32>
    %15 = vector.extract_strided_slice %14 {offsets = [0, 0], sizes = [2, 32], strides = [1, 1]} : vector<2x128xf32> to vector<2x32xf32>
    %16 = arith.negf %15 : vector<2x32xf32>
    %17 = math.exp %16 : vector<2x32xf32>
    %cst_13 = arith.constant 1.000000e+00 : f32
    %18 = vector.broadcast %cst_13 : f32 to vector<2x32xf32>
    %19 = arith.addf %18, %17 : vector<2x32xf32>
    %20 = arith.divf %18, %19 : vector<2x32xf32>
    %21 = vector.extract_strided_slice %14 {offsets = [0, 32], sizes = [2, 32], strides = [1, 1]} : vector<2x128xf32> to vector<2x32xf32>
    %22 = arith.negf %21 : vector<2x32xf32>
    %23 = math.exp %22 : vector<2x32xf32>
    %cst_14 = arith.constant 1.000000e+00 : f32
    %24 = vector.broadcast %cst_14 : f32 to vector<2x32xf32>
    %25 = arith.addf %24, %23 : vector<2x32xf32>
    %26 = arith.divf %24, %25 : vector<2x32xf32>
    %27 = vector.extract_strided_slice %14 {offsets = [0, 64], sizes = [2, 32], strides = [1, 1]} : vector<2x128xf32> to vector<2x32xf32>
    %28 = arith.negf %27 : vector<2x32xf32>
    %29 = math.exp %28 : vector<2x32xf32>
    %cst_15 = arith.constant 1.000000e+00 : f32
    %30 = vector.broadcast %cst_15 : f32 to vector<2x32xf32>
    %31 = arith.addf %30, %29 : vector<2x32xf32>
    %32 = arith.divf %30, %31 : vector<2x32xf32>
    %33 = vector.extract_strided_slice %14 {offsets = [0, 96], sizes = [2, 32], strides = [1, 1]} : vector<2x128xf32> to vector<2x32xf32>
    %34 = math.tanh %33 : vector<2x32xf32>
    %35 = arith.mulf %20, %9 : vector<2x32xf32>
    %36 = arith.mulf %26, %34 : vector<2x32xf32>
    %37 = arith.addf %35, %36 : vector<2x32xf32>
    %38 = math.tanh %37 : vector<2x32xf32>
    %39 = arith.mulf %32, %38 : vector<2x32xf32>
    %c2_i32_16 = arith.constant 2 : i32
    %40 = arith.muli %c0_i32, %c2_i32_16 : i32
    %41 = arith.index_cast %40 : i32 to index
    %c0_17 = arith.constant 0 : index
    %42 = vector.load %arg4[%41, %c0_17] : memref<16x32xf32, #tpu.memory_space<vmem>>, vector<2x32xf32>
    tpu.vector_store %arg4[%41, %c0_17], %39 {strides = array<i32>} : memref<16x32xf32, #tpu.memory_space<vmem>>, vector<2x32xf32>,
    %c1_i32 = arith.constant 1 : i32
    %c2_i32_18 = arith.constant 2 : i32
    %43 = arith.muli %c1_i32, %c2_i32_18 : i32
    %44 = arith.index_cast %43 : i32 to index
    %c0_19 = arith.constant 0 : index
    %45 = vector.load %arg6[%44, %c0_19] : memref<16x128xf32, #tpu.memory_space<vmem>>, vector<2x128xf32>
    %cst_20 = arith.constant dense<0.000000e+00> : vector<2x128xf32>
    %46 = tpu.matmul %39, %7, %cst_20 {dimension_numbers = #tpu.dot_dimension_numbers<[1], [0], [0], [1], [0, 0, 1, 1], [], []>} : vector<2x32xf32>, vector<32x128xf32>, vector<2x128xf32> -> vector<2x128xf32>
    %47 = arith.addf %45, %46 : vector<2x128xf32>
    %48 = vector.extract_strided_slice %47 {offsets = [0, 0], sizes = [2, 32], strides = [1, 1]} : vector<2x128xf32> to vector<2x32xf32>
    %49 = arith.negf %48 : vector<2x32xf32>
    %50 = math.exp %49 : vector<2x32xf32>
    %cst_21 = arith.constant 1.000000e+00 : f32
    %51 = vector.broadcast %cst_21 : f32 to vector<2x32xf32>
    %52 = arith.addf %51, %50 : vector<2x32xf32>
    %53 = arith.divf %51, %52 : vector<2x32xf32>
    %54 = vector.extract_strided_slice %47 {offsets = [0, 32], sizes = [2, 32], strides = [1, 1]} : vector<2x128xf32> to vector<2x32xf32>
    %55 = arith.negf %54 : vector<2x32xf32>
    %56 = math.exp %55 : vector<2x32xf32>
    %cst_22 = arith.constant 1.000000e+00 : f32
    %57 = vector.broadcast %cst_22 : f32 to vector<2x32xf32>
    %58 = arith.addf %57, %56 : vector<2x32xf32>
    %59 = arith.divf %57, %58 : vector<2x32xf32>
    %60 = vector.extract_strided_slice %47 {offsets = [0, 64], sizes = [2, 32], strides = [1, 1]} : vector<2x128xf32> to vector<2x32xf32>
    %61 = arith.negf %60 : vector<2x32xf32>
    %62 = math.exp %61 : vector<2x32xf32>
    %cst_23 = arith.constant 1.000000e+00 : f32
    %63 = vector.broadcast %cst_23 : f32 to vector<2x32xf32>
    %64 = arith.addf %63, %62 : vector<2x32xf32>
    %65 = arith.divf %63, %64 : vector<2x32xf32>
    %66 = vector.extract_strided_slice %47 {offsets = [0, 96], sizes = [2, 32], strides = [1, 1]} : vector<2x128xf32> to vector<2x32xf32>
    %67 = math.tanh %66 : vector<2x32xf32>
    %68 = arith.mulf %53, %37 : vector<2x32xf32>
    %69 = arith.mulf %59, %67 : vector<2x32xf32>
    %70 = arith.addf %68, %69 : vector<2x32xf32>
    %71 = math.tanh %70 : vector<2x32xf32>
    %72 = arith.mulf %65, %71 : vector<2x32xf32>
    %c2_i32_24 = arith.constant 2 : i32
    %73 = arith.muli %c1_i32, %c2_i32_24 : i32
    %74 = arith.index_cast %73 : i32 to index
    %c0_25 = arith.constant 0 : index
    %75 = vector.load %arg4[%74, %c0_25] : memref<16x32xf32, #tpu.memory_space<vmem>>, vector<2x32xf32>
    tpu.vector_store %arg4[%74, %c0_25], %72 {strides = array<i32>} : memref<16x32xf32, #tpu.memory_space<vmem>>, vector<2x32xf32>,
    %c2_i32_26 = arith.constant 2 : i32
    %c2_i32_27 = arith.constant 2 : i32
    %76 = arith.muli %c2_i32_26, %c2_i32_27 : i32
    %77 = arith.index_cast %76 : i32 to index
    %c0_28 = arith.constant 0 : index
    %78 = vector.load %arg6[%77, %c0_28] : memref<16x128xf32, #tpu.memory_space<vmem>>, vector<2x128xf32>
    %cst_29 = arith.constant dense<0.000000e+00> : vector<2x128xf32>
    %79 = tpu.matmul %72, %7, %cst_29 {dimension_numbers = #tpu.dot_dimension_numbers<[1], [0], [0], [1], [0, 0, 1, 1], [], []>} : vector<2x32xf32>, vector<32x128xf32>, vector<2x128xf32> -> vector<2x128xf32>
    %80 = arith.addf %78, %79 : vector<2x128xf32>
    %81 = vector.extract_strided_slice %80 {offsets = [0, 0], sizes = [2, 32], strides = [1, 1]} : vector<2x128xf32> to vector<2x32xf32>
    %82 = arith.negf %81 : vector<2x32xf32>
    %83 = math.exp %82 : vector<2x32xf32>
    %cst_30 = arith.constant 1.000000e+00 : f32
    %84 = vector.broadcast %cst_30 : f32 to vector<2x32xf32>
    %85 = arith.addf %84, %83 : vector<2x32xf32>
    %86 = arith.divf %84, %85 : vector<2x32xf32>
    %87 = vector.extract_strided_slice %80 {offsets = [0, 32], sizes = [2, 32], strides = [1, 1]} : vector<2x128xf32> to vector<2x32xf32>
    %88 = arith.negf %87 : vector<2x32xf32>
    %89 = math.exp %88 : vector<2x32xf32>
    %cst_31 = arith.constant 1.000000e+00 : f32
    %90 = vector.broadcast %cst_31 : f32 to vector<2x32xf32>
    %91 = arith.addf %90, %89 : vector<2x32xf32>
    %92 = arith.divf %90, %91 : vector<2x32xf32>
    %93 = vector.extract_strided_slice %80 {offsets = [0, 64], sizes = [2, 32], strides = [1, 1]} : vector<2x128xf32> to vector<2x32xf32>
    %94 = arith.negf %93 : vector<2x32xf32>
    %95 = math.exp %94 : vector<2x32xf32>
    %cst_32 = arith.constant 1.000000e+00 : f32
    %96 = vector.broadcast %cst_32 : f32 to vector<2x32xf32>
    %97 = arith.addf %96, %95 : vector<2x32xf32>
    %98 = arith.divf %96, %97 : vector<2x32xf32>
    %99 = vector.extract_strided_slice %80 {offsets = [0, 96], sizes = [2, 32], strides = [1, 1]} : vector<2x128xf32> to vector<2x32xf32>
    %100 = math.tanh %99 : vector<2x32xf32>
    %101 = arith.mulf %86, %70 : vector<2x32xf32>
    %102 = arith.mulf %92, %100 : vector<2x32xf32>
    %103 = arith.addf %101, %102 : vector<2x32xf32>
    %104 = math.tanh %103 : vector<2x32xf32>
    %105 = arith.mulf %98, %104 : vector<2x32xf32>
    %c2_i32_33 = arith.constant 2 : i32
    %106 = arith.muli %c2_i32_26, %c2_i32_33 : i32
    %107 = arith.index_cast %106 : i32 to index
    %c0_34 = arith.constant 0 : index
    %108 = vector.load %arg4[%107, %c0_34] : memref<16x32xf32, #tpu.memory_space<vmem>>, vector<2x32xf32>
    tpu.vector_store %arg4[%107, %c0_34], %105 {strides = array<i32>} : memref<16x32xf32, #tpu.memory_space<vmem>>, vector<2x32xf32>,
    %c3_i32 = arith.constant 3 : i32
    %c2_i32_35 = arith.constant 2 : i32
    %109 = arith.muli %c3_i32, %c2_i32_35 : i32
    %110 = arith.index_cast %109 : i32 to index
    %c0_36 = arith.constant 0 : index
    %111 = vector.load %arg6[%110, %c0_36] : memref<16x128xf32, #tpu.memory_space<vmem>>, vector<2x128xf32>
    %cst_37 = arith.constant dense<0.000000e+00> : vector<2x128xf32>
    %112 = tpu.matmul %105, %7, %cst_37 {dimension_numbers = #tpu.dot_dimension_numbers<[1], [0], [0], [1], [0, 0, 1, 1], [], []>} : vector<2x32xf32>, vector<32x128xf32>, vector<2x128xf32> -> vector<2x128xf32>
    %113 = arith.addf %111, %112 : vector<2x128xf32>
    %114 = vector.extract_strided_slice %113 {offsets = [0, 0], sizes = [2, 32], strides = [1, 1]} : vector<2x128xf32> to vector<2x32xf32>
    %115 = arith.negf %114 : vector<2x32xf32>
    %116 = math.exp %115 : vector<2x32xf32>
    %cst_38 = arith.constant 1.000000e+00 : f32
    %117 = vector.broadcast %cst_38 : f32 to vector<2x32xf32>
    %118 = arith.addf %117, %116 : vector<2x32xf32>
    %119 = arith.divf %117, %118 : vector<2x32xf32>
    %120 = vector.extract_strided_slice %113 {offsets = [0, 32], sizes = [2, 32], strides = [1, 1]} : vector<2x128xf32> to vector<2x32xf32>
    %121 = arith.negf %120 : vector<2x32xf32>
    %122 = math.exp %121 : vector<2x32xf32>
    %cst_39 = arith.constant 1.000000e+00 : f32
    %123 = vector.broadcast %cst_39 : f32 to vector<2x32xf32>
    %124 = arith.addf %123, %122 : vector<2x32xf32>
    %125 = arith.divf %123, %124 : vector<2x32xf32>
    %126 = vector.extract_strided_slice %113 {offsets = [0, 64], sizes = [2, 32], strides = [1, 1]} : vector<2x128xf32> to vector<2x32xf32>
    %127 = arith.negf %126 : vector<2x32xf32>
    %128 = math.exp %127 : vector<2x32xf32>
    %cst_40 = arith.constant 1.000000e+00 : f32
    %129 = vector.broadcast %cst_40 : f32 to vector<2x32xf32>
    %130 = arith.addf %129, %128 : vector<2x32xf32>
    %131 = arith.divf %129, %130 : vector<2x32xf32>
    %132 = vector.extract_strided_slice %113 {offsets = [0, 96], sizes = [2, 32], strides = [1, 1]} : vector<2x128xf32> to vector<2x32xf32>
    %133 = math.tanh %132 : vector<2x32xf32>
    %134 = arith.mulf %119, %103 : vector<2x32xf32>
    %135 = arith.mulf %125, %133 : vector<2x32xf32>
    %136 = arith.addf %134, %135 : vector<2x32xf32>
    %137 = math.tanh %136 : vector<2x32xf32>
    %138 = arith.mulf %131, %137 : vector<2x32xf32>
    %c2_i32_41 = arith.constant 2 : i32
    %139 = arith.muli %c3_i32, %c2_i32_41 : i32
    %140 = arith.index_cast %139 : i32 to index
    %c0_42 = arith.constant 0 : index
    %141 = vector.load %arg4[%140, %c0_42] : memref<16x32xf32, #tpu.memory_space<vmem>>, vector<2x32xf32>
    tpu.vector_store %arg4[%140, %c0_42], %138 {strides = array<i32>} : memref<16x32xf32, #tpu.memory_space<vmem>>, vector<2x32xf32>,
    %c4_i32 = arith.constant 4 : i32
    %c2_i32_43 = arith.constant 2 : i32
    %142 = arith.muli %c4_i32, %c2_i32_43 : i32
    %143 = arith.index_cast %142 : i32 to index
    %c0_44 = arith.constant 0 : index
    %144 = vector.load %arg6[%143, %c0_44] : memref<16x128xf32, #tpu.memory_space<vmem>>, vector<2x128xf32>
    %cst_45 = arith.constant dense<0.000000e+00> : vector<2x128xf32>
    %145 = tpu.matmul %138, %7, %cst_45 {dimension_numbers = #tpu.dot_dimension_numbers<[1], [0], [0], [1], [0, 0, 1, 1], [], []>} : vector<2x32xf32>, vector<32x128xf32>, vector<2x128xf32> -> vector<2x128xf32>
    %146 = arith.addf %144, %145 : vector<2x128xf32>
    %147 = vector.extract_strided_slice %146 {offsets = [0, 0], sizes = [2, 32], strides = [1, 1]} : vector<2x128xf32> to vector<2x32xf32>
    %148 = arith.negf %147 : vector<2x32xf32>
    %149 = math.exp %148 : vector<2x32xf32>
    %cst_46 = arith.constant 1.000000e+00 : f32
    %150 = vector.broadcast %cst_46 : f32 to vector<2x32xf32>
    %151 = arith.addf %150, %149 : vector<2x32xf32>
    %152 = arith.divf %150, %151 : vector<2x32xf32>
    %153 = vector.extract_strided_slice %146 {offsets = [0, 32], sizes = [2, 32], strides = [1, 1]} : vector<2x128xf32> to vector<2x32xf32>
    %154 = arith.negf %153 : vector<2x32xf32>
    %155 = math.exp %154 : vector<2x32xf32>
    %cst_47 = arith.constant 1.000000e+00 : f32
    %156 = vector.broadcast %cst_47 : f32 to vector<2x32xf32>
    %157 = arith.addf %156, %155 : vector<2x32xf32>
    %158 = arith.divf %156, %157 : vector<2x32xf32>
    %159 = vector.extract_strided_slice %146 {offsets = [0, 64], sizes = [2, 32], strides = [1, 1]} : vector<2x128xf32> to vector<2x32xf32>
    %160 = arith.negf %159 : vector<2x32xf32>
    %161 = math.exp %160 : vector<2x32xf32>
    %cst_48 = arith.constant 1.000000e+00 : f32
    %162 = vector.broadcast %cst_48 : f32 to vector<2x32xf32>
    %163 = arith.addf %162, %161 : vector<2x32xf32>
    %164 = arith.divf %162, %163 : vector<2x32xf32>
    %165 = vector.extract_strided_slice %146 {offsets = [0, 96], sizes = [2, 32], strides = [1, 1]} : vector<2x128xf32> to vector<2x32xf32>
    %166 = math.tanh %165 : vector<2x32xf32>
    %167 = arith.mulf %152, %136 : vector<2x32xf32>
    %168 = arith.mulf %158, %166 : vector<2x32xf32>
    %169 = arith.addf %167, %168 : vector<2x32xf32>
    %170 = math.tanh %169 : vector<2x32xf32>
    %171 = arith.mulf %164, %170 : vector<2x32xf32>
    %c2_i32_49 = arith.constant 2 : i32
    %172 = arith.muli %c4_i32, %c2_i32_49 : i32
    %173 = arith.index_cast %172 : i32 to index
    %c0_50 = arith.constant 0 : index
    %174 = vector.load %arg4[%173, %c0_50] : memref<16x32xf32, #tpu.memory_space<vmem>>, vector<2x32xf32>
    tpu.vector_store %arg4[%173, %c0_50], %171 {strides = array<i32>} : memref<16x32xf32, #tpu.memory_space<vmem>>, vector<2x32xf32>,
    %c5_i32 = arith.constant 5 : i32
    %c2_i32_51 = arith.constant 2 : i32
    %175 = arith.muli %c5_i32, %c2_i32_51 : i32
    %176 = arith.index_cast %175 : i32 to index
    %c0_52 = arith.constant 0 : index
    %177 = vector.load %arg6[%176, %c0_52] : memref<16x128xf32, #tpu.memory_space<vmem>>, vector<2x128xf32>
    %cst_53 = arith.constant dense<0.000000e+00> : vector<2x128xf32>
    %178 = tpu.matmul %171, %7, %cst_53 {dimension_numbers = #tpu.dot_dimension_numbers<[1], [0], [0], [1], [0, 0, 1, 1], [], []>} : vector<2x32xf32>, vector<32x128xf32>, vector<2x128xf32> -> vector<2x128xf32>
    %179 = arith.addf %177, %178 : vector<2x128xf32>
    %180 = vector.extract_strided_slice %179 {offsets = [0, 0], sizes = [2, 32], strides = [1, 1]} : vector<2x128xf32> to vector<2x32xf32>
    %181 = arith.negf %180 : vector<2x32xf32>
    %182 = math.exp %181 : vector<2x32xf32>
    %cst_54 = arith.constant 1.000000e+00 : f32
    %183 = vector.broadcast %cst_54 : f32 to vector<2x32xf32>
    %184 = arith.addf %183, %182 : vector<2x32xf32>
    %185 = arith.divf %183, %184 : vector<2x32xf32>
    %186 = vector.extract_strided_slice %179 {offsets = [0, 32], sizes = [2, 32], strides = [1, 1]} : vector<2x128xf32> to vector<2x32xf32>
    %187 = arith.negf %186 : vector<2x32xf32>
    %188 = math.exp %187 : vector<2x32xf32>
    %cst_55 = arith.constant 1.000000e+00 : f32
    %189 = vector.broadcast %cst_55 : f32 to vector<2x32xf32>
    %190 = arith.addf %189, %188 : vector<2x32xf32>
    %191 = arith.divf %189, %190 : vector<2x32xf32>
    %192 = vector.extract_strided_slice %179 {offsets = [0, 64], sizes = [2, 32], strides = [1, 1]} : vector<2x128xf32> to vector<2x32xf32>
    %193 = arith.negf %192 : vector<2x32xf32>
    %194 = math.exp %193 : vector<2x32xf32>
    %cst_56 = arith.constant 1.000000e+00 : f32
    %195 = vector.broadcast %cst_56 : f32 to vector<2x32xf32>
    %196 = arith.addf %195, %194 : vector<2x32xf32>
    %197 = arith.divf %195, %196 : vector<2x32xf32>
    %198 = vector.extract_strided_slice %179 {offsets = [0, 96], sizes = [2, 32], strides = [1, 1]} : vector<2x128xf32> to vector<2x32xf32>
    %199 = math.tanh %198 : vector<2x32xf32>
    %200 = arith.mulf %185, %169 : vector<2x32xf32>
    %201 = arith.mulf %191, %199 : vector<2x32xf32>
    %202 = arith.addf %200, %201 : vector<2x32xf32>
    %203 = math.tanh %202 : vector<2x32xf32>
    %204 = arith.mulf %197, %203 : vector<2x32xf32>
    %c2_i32_57 = arith.constant 2 : i32
    %205 = arith.muli %c5_i32, %c2_i32_57 : i32
    %206 = arith.index_cast %205 : i32 to index
    %c0_58 = arith.constant 0 : index
    %207 = vector.load %arg4[%206, %c0_58] : memref<16x32xf32, #tpu.memory_space<vmem>>, vector<2x32xf32>
    tpu.vector_store %arg4[%206, %c0_58], %204 {strides = array<i32>} : memref<16x32xf32, #tpu.memory_space<vmem>>, vector<2x32xf32>,
    %c6_i32 = arith.constant 6 : i32
    %c2_i32_59 = arith.constant 2 : i32
    %208 = arith.muli %c6_i32, %c2_i32_59 : i32
    %209 = arith.index_cast %208 : i32 to index
    %c0_60 = arith.constant 0 : index
    %210 = vector.load %arg6[%209, %c0_60] : memref<16x128xf32, #tpu.memory_space<vmem>>, vector<2x128xf32>
    %cst_61 = arith.constant dense<0.000000e+00> : vector<2x128xf32>
    %211 = tpu.matmul %204, %7, %cst_61 {dimension_numbers = #tpu.dot_dimension_numbers<[1], [0], [0], [1], [0, 0, 1, 1], [], []>} : vector<2x32xf32>, vector<32x128xf32>, vector<2x128xf32> -> vector<2x128xf32>
    %212 = arith.addf %210, %211 : vector<2x128xf32>
    %213 = vector.extract_strided_slice %212 {offsets = [0, 0], sizes = [2, 32], strides = [1, 1]} : vector<2x128xf32> to vector<2x32xf32>
    %214 = arith.negf %213 : vector<2x32xf32>
    %215 = math.exp %214 : vector<2x32xf32>
    %cst_62 = arith.constant 1.000000e+00 : f32
    %216 = vector.broadcast %cst_62 : f32 to vector<2x32xf32>
    %217 = arith.addf %216, %215 : vector<2x32xf32>
    %218 = arith.divf %216, %217 : vector<2x32xf32>
    %219 = vector.extract_strided_slice %212 {offsets = [0, 32], sizes = [2, 32], strides = [1, 1]} : vector<2x128xf32> to vector<2x32xf32>
    %220 = arith.negf %219 : vector<2x32xf32>
    %221 = math.exp %220 : vector<2x32xf32>
    %cst_63 = arith.constant 1.000000e+00 : f32
    %222 = vector.broadcast %cst_63 : f32 to vector<2x32xf32>
    %223 = arith.addf %222, %221 : vector<2x32xf32>
    %224 = arith.divf %222, %223 : vector<2x32xf32>
    %225 = vector.extract_strided_slice %212 {offsets = [0, 64], sizes = [2, 32], strides = [1, 1]} : vector<2x128xf32> to vector<2x32xf32>
    %226 = arith.negf %225 : vector<2x32xf32>
    %227 = math.exp %226 : vector<2x32xf32>
    %cst_64 = arith.constant 1.000000e+00 : f32
    %228 = vector.broadcast %cst_64 : f32 to vector<2x32xf32>
    %229 = arith.addf %228, %227 : vector<2x32xf32>
    %230 = arith.divf %228, %229 : vector<2x32xf32>
    %231 = vector.extract_strided_slice %212 {offsets = [0, 96], sizes = [2, 32], strides = [1, 1]} : vector<2x128xf32> to vector<2x32xf32>
    %232 = math.tanh %231 : vector<2x32xf32>
    %233 = arith.mulf %218, %202 : vector<2x32xf32>
    %234 = arith.mulf %224, %232 : vector<2x32xf32>
    %235 = arith.addf %233, %234 : vector<2x32xf32>
    %236 = math.tanh %235 : vector<2x32xf32>
    %237 = arith.mulf %230, %236 : vector<2x32xf32>
    %c2_i32_65 = arith.constant 2 : i32
    %238 = arith.muli %c6_i32, %c2_i32_65 : i32
    %239 = arith.index_cast %238 : i32 to index
    %c0_66 = arith.constant 0 : index
    %240 = vector.load %arg4[%239, %c0_66] : memref<16x32xf32, #tpu.memory_space<vmem>>, vector<2x32xf32>
    tpu.vector_store %arg4[%239, %c0_66], %237 {strides = array<i32>} : memref<16x32xf32, #tpu.memory_space<vmem>>, vector<2x32xf32>,
    %c7_i32 = arith.constant 7 : i32
    %c2_i32_67 = arith.constant 2 : i32
    %241 = arith.muli %c7_i32, %c2_i32_67 : i32
    %242 = arith.index_cast %241 : i32 to index
    %c0_68 = arith.constant 0 : index
    %243 = vector.load %arg6[%242, %c0_68] : memref<16x128xf32, #tpu.memory_space<vmem>>, vector<2x128xf32>
    %cst_69 = arith.constant dense<0.000000e+00> : vector<2x128xf32>
    %244 = tpu.matmul %237, %7, %cst_69 {dimension_numbers = #tpu.dot_dimension_numbers<[1], [0], [0], [1], [0, 0, 1, 1], [], []>} : vector<2x32xf32>, vector<32x128xf32>, vector<2x128xf32> -> vector<2x128xf32>
    %245 = arith.addf %243, %244 : vector<2x128xf32>
    %246 = vector.extract_strided_slice %245 {offsets = [0, 0], sizes = [2, 32], strides = [1, 1]} : vector<2x128xf32> to vector<2x32xf32>
    %247 = arith.negf %246 : vector<2x32xf32>
    %248 = math.exp %247 : vector<2x32xf32>
    %cst_70 = arith.constant 1.000000e+00 : f32
    %249 = vector.broadcast %cst_70 : f32 to vector<2x32xf32>
    %250 = arith.addf %249, %248 : vector<2x32xf32>
    %251 = arith.divf %249, %250 : vector<2x32xf32>
    %252 = vector.extract_strided_slice %245 {offsets = [0, 32], sizes = [2, 32], strides = [1, 1]} : vector<2x128xf32> to vector<2x32xf32>
    %253 = arith.negf %252 : vector<2x32xf32>
    %254 = math.exp %253 : vector<2x32xf32>
    %cst_71 = arith.constant 1.000000e+00 : f32
    %255 = vector.broadcast %cst_71 : f32 to vector<2x32xf32>
    %256 = arith.addf %255, %254 : vector<2x32xf32>
    %257 = arith.divf %255, %256 : vector<2x32xf32>
    %258 = vector.extract_strided_slice %245 {offsets = [0, 64], sizes = [2, 32], strides = [1, 1]} : vector<2x128xf32> to vector<2x32xf32>
    %259 = arith.negf %258 : vector<2x32xf32>
    %260 = math.exp %259 : vector<2x32xf32>
    %cst_72 = arith.constant 1.000000e+00 : f32
    %261 = vector.broadcast %cst_72 : f32 to vector<2x32xf32>
    %262 = arith.addf %261, %260 : vector<2x32xf32>
    %263 = arith.divf %261, %262 : vector<2x32xf32>
    %264 = vector.extract_strided_slice %245 {offsets = [0, 96], sizes = [2, 32], strides = [1, 1]} : vector<2x128xf32> to vector<2x32xf32>
    %265 = math.tanh %264 : vector<2x32xf32>
    %266 = arith.mulf %251, %235 : vector<2x32xf32>
    %267 = arith.mulf %257, %265 : vector<2x32xf32>
    %268 = arith.addf %266, %267 : vector<2x32xf32>
    %269 = math.tanh %268 : vector<2x32xf32>
    %270 = arith.mulf %263, %269 : vector<2x32xf32>
    %c2_i32_73 = arith.constant 2 : i32
    %271 = arith.muli %c7_i32, %c2_i32_73 : i32
    %272 = arith.index_cast %271 : i32 to index
    %c0_74 = arith.constant 0 : index
    %273 = vector.load %arg4[%272, %c0_74] : memref<16x32xf32, #tpu.memory_space<vmem>>, vector<2x32xf32>
    tpu.vector_store %arg4[%272, %c0_74], %270 {strides = array<i32>} : memref<16x32xf32, #tpu.memory_space<vmem>>, vector<2x32xf32>,
    %c8_i32 = arith.constant 8 : i32
    %c0_75 = arith.constant 0 : index
    %c0_76 = arith.constant 0 : index
    %274 = vector.load %arg5[%c0_75, %c0_76] : memref<2x32xf32, #tpu.memory_space<vmem>>, vector<2x32xf32>
    tpu.vector_store %arg5[%c0_75, %c0_76], %270 {strides = array<i32>} : memref<2x32xf32, #tpu.memory_space<vmem>>, vector<2x32xf32>,
    return
  }
}

</mosaic_0001>

<llo_original>
// kernel: tpu_custom_call.1
$region0: #{tpu_custom_call.1}
  #allocation0 [shape = 'u32[]', space=smem, size = 0x4, offset = 0x4, fixed_abs, tag = 'smem constant byte address 0x4 - core index']
  #allocation1 [shape = 'u32[144,128]{1,0:T(1,128)}', space=vmem, size = 0x12000, scoped, tag = 'internal scratch']
  #allocation2 [shape = 'f32[16,128]{1,0:T(8,128)}', space=vmem, size = 0x2000, scoped, tag = 'scratch operand']
  %s0 = inlined_call_operand.hbm [shape: f32[16,16], index: 0, kind: input, shape index: {}]
  %s1 = inlined_call_operand.hbm [shape: f32[16,128], index: 1, kind: input, shape index: {}]
  %s2 = inlined_call_operand.hbm [shape: f32[32,128], index: 2, kind: input, shape index: {}]
  %s3 = inlined_call_operand.vmem [shape: f32[1,128], index: 3, kind: input, shape index: {}]
  %s4 = inlined_call_operand.hbm [shape: f32[16,32], index: 4, kind: output, shape index: {0}]
  %s5 = inlined_call_operand.hbm [shape: f32[2,32], index: 5, kind: output, shape index: {1}]
  %6 = xla_tuple %s4, %s5
  %s7 = sld [smem:[#allocation0]]
  $region46: #{tpu_custom_call.1} parent=0
    _
  %s9 = ssub.s32 1, %s7
  %s10 = scalar_select 0, %s9, %s7
  $region1: #{tpu_custom_call.1} parent=0
    #allocation3 [shape = 'u8[8192]{0}', space=vmem, size = 0x2000, scoped, tag = 'input window, operand 0, single buffered']
    #allocation4 [shape = 's32[1]{0}', space=sflag, size = 0x4, scoped, tag = 'scoped memory for tpu_custom_call.1']
    #allocation5 [shape = 's32[1]{0}', space=sflag, size = 0x4, scoped, tag = 'scoped memory for tpu_custom_call.1']
    #allocation6 [shape = 'u8[8192]{0}', space=vmem, size = 0x2000, scoped, tag = 'input window, operand 1, single buffered']
    #allocation7 [shape = 's32[1]{0}', space=sflag, size = 0x4, scoped, tag = 'scoped memory for tpu_custom_call.1']
    #allocation8 [shape = 'u8[16384]{0}', space=vmem, size = 0x4000, scoped, tag = 'input window, operand 2, single buffered']
    #allocation9 [shape = 'u8[8192]{0}', space=vmem, size = 0x2000, scoped, tag = 'output window, operand 0, single buffered']
    #allocation10 [shape = 'u8[1024]{0}', space=vmem, size = 0x400, scoped, tag = 'output window, operand 1, single buffered']
    #allocation11 [shape = 's32[1]{0}', space=sflag, size = 0x4, scoped, tag = 'scoped memory for tpu_custom_call.1']
    %11 = vsyncpa [#allocation4], 0
    %12 = vsyncpa [#allocation7], 0
    %13 = vsyncpa [#allocation5], 0
    %14 = vsyncpa [#allocation11], 0
    // Predicated region
    $region2: #{tpu_custom_call.1} parent=1 // pred_check
      _
    $region3: #{tpu_custom_call.1} parent=1 // pred_check_branch
      %16 = sbr.rel (0) target = $region5
    $region4: #{tpu_custom_call.1} parent=1 // pred_region
      %s18 = ssub.s32 256, 256
      %19 = vsyncadd [#allocation4], %s18
      %s20 = sshll.u32 [#allocation3], 4
      %s21 = int_to_ptr.vmem [resolvable:$true] %s20
      %26 = dma.hbm_to_vmem [thread:$0]  %s0, 256, %s21, [#allocation4], 128, 128, 8
    $region5: #{tpu_custom_call.1} parent=1 // pred_fallthru
      _
    // Predicated region
    $region6: #{tpu_custom_call.1} parent=1 // pred_check
      _
    $region7: #{tpu_custom_call.1} parent=1 // pred_check_branch
      %28 = sbr.rel (0) target = $region9
    $region8: #{tpu_custom_call.1} parent=1 // pred_region
      %s30 = ssub.s32 256, 256
      %31 = vsyncadd [#allocation7], %s30
      %s32 = sshll.u32 [#allocation6], 4
      %s33 = int_to_ptr.vmem [resolvable:$true] %s32
      %38 = dma.hbm_to_vmem [thread:$0]  %s1, 256, %s33, [#allocation7], 128, 128, 8
    $region9: #{tpu_custom_call.1} parent=1 // pred_fallthru
      _
    // Predicated region
    $region10: #{tpu_custom_call.1} parent=1 // pred_check
      _
    $region11: #{tpu_custom_call.1} parent=1 // pred_check_branch
      %40 = sbr.rel (0) target = $region13
    $region12: #{tpu_custom_call.1} parent=1 // pred_region
      %s42 = ssub.s32 512, 512
      %43 = vsyncadd [#allocation7], %s42
      %s44 = sshll.u32 [#allocation8], 4
      %s45 = int_to_ptr.vmem [resolvable:$true] %s44
      %50 = dma.hbm_to_vmem [thread:$0]  %s2, 512, %s45, [#allocation7], 128, 128, 8
    $region13: #{tpu_custom_call.1} parent=1 // pred_fallthru
      _
    // Predicated region
    $region14: #{tpu_custom_call.1} parent=1 // pred_check
      _
    $region15: #{tpu_custom_call.1} parent=1 // pred_check_branch
      %52 = sbr.rel (0) target = $region17
    $region16: #{tpu_custom_call.1} parent=1 // pred_region
      _
    $region17: #{tpu_custom_call.1} parent=1 // pred_fallthru
      _
    // Predicated region
    $region18: #{tpu_custom_call.1} parent=1 // pred_check
      _
    $region19: #{tpu_custom_call.1} parent=1 // pred_check_branch
      %54 = sbr.rel (0) target = $region21
    $region20: #{tpu_custom_call.1} parent=1 // pred_region
      %55 = dma.done [#allocation4], 256
    $region21: #{tpu_custom_call.1} parent=1 // pred_fallthru
      _
    // Predicated region
    $region22: #{tpu_custom_call.1} parent=1 // pred_check
      _
    $region23: #{tpu_custom_call.1} parent=1 // pred_check_branch
      %57 = sbr.rel (0) target = $region25
    $region24: #{tpu_custom_call.1} parent=1 // pred_region
      %58 = dma.done [#allocation7], 256
    $region25: #{tpu_custom_call.1} parent=1 // pred_fallthru
      _
    // Predicated region
    $region26: #{tpu_custom_call.1} parent=1 // pred_check
      _
    $region27: #{tpu_custom_call.1} parent=1 // pred_check_branch
      %60 = sbr.rel (0) target = $region29
    $region28: #{tpu_custom_call.1} parent=1 // pred_region
      %61 = dma.done [#allocation7], 512
    $region29: #{tpu_custom_call.1} parent=1 // pred_fallthru
      _
    %v62 = vld [vmem:[#allocation3] sm:$0xff]
    %v63 = vld [vmem:[#allocation3 + $0x8] sm:$0xff]
    %v64 = vld [vmem:[#allocation6] sm:$0xff]
    %v65 = vld [vmem:[#allocation6 + $0x8] sm:$0xff]
    %v66 = vld [vmem:[%s3] sm:$0x1]
    %v68 = vlaneseq
    %v69 = vshrl.u32 %v68, 7
    %v70 = vsub.s32 0, %v69
    %v71 = vrot.slane %v66, %v70
    %vm73 = vcmask 130048
    %v75 = vsel %vm73, %v62, 0
    %v78 = vsel %vm73, %v63, 0
    %80 = vmatprep.subr.mxu0 0.0
    %81 = vmatpush1.msra.mxu0 %v64
    %82 = vmatprep.subr.mxu0 0.0
    %83 = vmatpush1.msra.mxu0 %v65
    %84 = vmatprep.subr.mxu0 0.0
    %85 = vmatpush1.msra.mxu0 0.0
    %86 = vmatprep.subr.mxu0 0.0
    %87 = vmatpush1.msra.mxu0 0.0
    %88 = vmatprep.subr.mxu0 0.0
    %89 = vmatpush1.msra.mxu0 0.0
    %90 = vmatprep.subr.mxu0 0.0
    %91 = vmatpush1.msra.mxu0 0.0
    %92 = vmatprep.subr.mxu0 0.0
    %93 = vmatpush1.msra.mxu0 0.0
    %94 = vmatprep.subr.mxu0 0.0
    %95 = vmatpush1.msra.mxu0 0.0
    %96 = vmatprep.subr.mxu0 0.0
    %97 = vmatpush1.msra.mxu0 0.0
    %98 = vmatprep.subr.mxu0 0.0
    %99 = vmatpush1.msra.mxu0 0.0
    %100 = vmatprep.subr.mxu0 0.0
    %101 = vmatpush1.msra.mxu0 0.0
    %102 = vmatprep.subr.mxu0 0.0
    %103 = vmatpush1.msra.mxu0 0.0
    %104 = vmatprep.subr.mxu0 0.0
    %105 = vmatpush1.msra.mxu0 0.0
    %106 = vmatprep.subr.mxu0 0.0
    %107 = vmatpush1.msra.mxu0 0.0
    %108 = vmatprep.subr.mxu0 0.0
    %109 = vmatpush1.msra.mxu0 0.0
    %110 = vmatprep.subr.mxu0 0.0
    %111 = vmatpush1.msra.mxu0 0.0
    %112 = vmatprep.subr.mxu0 0.0
    %113 = vmatpush1.msra.mxu0 0.0
    %114 = vmatprep.subr.mxu0 0.0
    %115 = vmatpush1.msra.mxu0 0.0
    %116 = vmatprep.subr.mxu0 0.0
    %117 = vmatpush1.msra.mxu0 0.0
    %118 = vmatprep.subr.mxu0 0.0
    %119 = vmatpush1.msra.mxu0 0.0
    %120 = vmatprep.subr.mxu0 0.0
    %121 = vmatpush1.msra.mxu0 0.0
    %122 = vmatprep.subr.mxu0 0.0
    %123 = vmatpush1.msra.mxu0 0.0
    %124 = vmatprep.subr.mxu0 0.0
    %125 = vmatpush1.msra.mxu0 0.0
    %126 = vmatprep.subr.mxu0 0.0
    %127 = vmatpush1.msra.mxu0 0.0
    %128 = vmatprep.subr.mxu0 0.0
    %129 = vmatpush1.msra.mxu0 0.0
    %130 = vmatprep.subr.mxu0 0.0
    %131 = vmatpush1.msra.mxu0 0.0
    %132 = vmatprep.subr.mxu0 0.0
    %133 = vmatpush1.msra.mxu0 0.0
    %134 = vmatprep.subr.mxu0 0.0
    %135 = vmatpush1.msra.mxu0 0.0
    %136 = vmatprep.subr.mxu0 0.0
    %137 = vmatpush1.msra.mxu0 0.0
    %138 = vmatprep.subr.mxu0 0.0
    %139 = vmatpush1.msra.mxu0 0.0
    %140 = vmatprep.subr.mxu0 0.0
    %141 = vmatpush1.msra.mxu0 0.0
    %142 = vmatprep.subr.mxu0 0.0
    %143 = vmatpush1.msra.mxu0 0.0
    %144 = vmatprep.mubr.f32.mxu0 0.0
    %145 = vmatmul.mubr.f32.gmra.mrb[0].mxu0 %v75
    %v146 = vpop.f32.mrb[0].mxu0
    %v147 = vadd.f32 %v71, %v146
    %v148 = vpop.f32.mrb[0].mxu0
    %149 = vmatprep.mubr.f32.mxu0 0.0
    %150 = vmatmul.mubr.f32.gmra.mrb[0].mxu0 %v78
    %v151 = vpop.f32.mrb[0].mxu0
    %v152 = vadd.f32 %v71, %v151
    %v153 = vpop.f32.mrb[0].mxu0
    %154 = vdwg.mxu0
    %155 = vst [vmem:[#allocation2] sm:$0xff] %v147
    %156 = vst [vmem:[#allocation2 + $0x8] sm:$0xff] %v152
    %v157 = vld [vmem:[#allocation8] sm:$0xff]
    %v158 = vld [vmem:[#allocation8 + $0x8] sm:$0xff]
    %v159 = vld [vmem:[#allocation8 + $0x10] sm:$0xff]
    %v160 = vld [vmem:[#allocation8 + $0x18] sm:$0xff]
    %v161 = vld [vmem:[#allocation2] sm:$0x3]
    %vm162 = vcmask 261120
    %v164 = vsel %vm162, 0.0, 0
    %166 = vmatprep.subr.mxu0 0.0
    %167 = vmatpush1.msra.mxu0 %v157
    %168 = vmatprep.subr.mxu0 0.0
    %169 = vmatpush1.msra.mxu0 %v158
    %170 = vmatprep.subr.mxu0 0.0
    %171 = vmatpush1.msra.mxu0 %v159
    %172 = vmatprep.subr.mxu0 0.0
    %173 = vmatpush1.msra.mxu0 %v160
    %174 = vmatprep.subr.mxu0 0.0
    %175 = vmatpush1.msra.mxu0 0.0
    %176 = vmatprep.subr.mxu0 0.0
    %177 = vmatpush1.msra.mxu0 0.0
    %178 = vmatprep.subr.mxu0 0.0
    %179 = vmatpush1.msra.mxu0 0.0
    %180 = vmatprep.subr.mxu0 0.0
    %181 = vmatpush1.msra.mxu0 0.0
    %182 = vmatprep.subr.mxu0 0.0
    %183 = vmatpush1.msra.mxu0 0.0
    %184 = vmatprep.subr.mxu0 0.0
    %185 = vmatpush1.msra.mxu0 0.0
    %186 = vmatprep.subr.mxu0 0.0
    %187 = vmatpush1.msra.mxu0 0.0
    %188 = vmatprep.subr.mxu0 0.0
    %189 = vmatpush1.msra.mxu0 0.0
    %190 = vmatprep.subr.mxu0 0.0
    %191 = vmatpush1.msra.mxu0 0.0
    %192 = vmatprep.subr.mxu0 0.0
    %193 = vmatpush1.msra.mxu0 0.0
    %194 = vmatprep.subr.mxu0 0.0
    %195 = vmatpush1.msra.mxu0 0.0
    %196 = vmatprep.subr.mxu0 0.0
    %197 = vmatpush1.msra.mxu0 0.0
    %198 = vmatprep.subr.mxu0 0.0
    %199 = vmatpush1.msra.mxu0 0.0
    %200 = vmatprep.subr.mxu0 0.0
    %201 = vmatpush1.msra.mxu0 0.0
    %202 = vmatprep.subr.mxu0 0.0
    %203 = vmatpush1.msra.mxu0 0.0
    %204 = vmatprep.subr.mxu0 0.0
    %205 = vmatpush1.msra.mxu0 0.0
    %206 = vmatprep.subr.mxu0 0.0
    %207 = vmatpush1.msra.mxu0 0.0
    %208 = vmatprep.subr.mxu0 0.0
    %209 = vmatpush1.msra.mxu0 0.0
    %210 = vmatprep.subr.mxu0 0.0
    %211 = vmatpush1.msra.mxu0 0.0
    %212 = vmatprep.subr.mxu0 0.0
    %213 = vmatpush1.msra.mxu0 0.0
    %214 = vmatprep.subr.mxu0 0.0
    %215 = vmatpush1.msra.mxu0 0.0
    %216 = vmatprep.subr.mxu0 0.0
    %217 = vmatpush1.msra.mxu0 0.0
    %218 = vmatprep.subr.mxu0 0.0
    %219 = vmatpush1.msra.mxu0 0.0
    %220 = vmatprep.subr.mxu0 0.0
    %221 = vmatpush1.msra.mxu0 0.0
    %222 = vmatprep.subr.mxu0 0.0
    %223 = vmatpush1.msra.mxu0 0.0
    %224 = vmatprep.subr.mxu0 0.0
    %225 = vmatpush1.msra.mxu0 0.0
    %226 = vmatprep.subr.mxu0 0.0
    %227 = vmatpush1.msra.mxu0 0.0
    %228 = vmatprep.subr.mxu0 0.0
    %229 = vmatpush1.msra.mxu0 0.0
    %230 = vmatprep.mubr.f32.mxu0 0.0
    %231 = vmatmul.mubr.f32.gmra.mrb[0].mxu0 %v164
    %v232 = vpop.f32.mrb[0].mxu0
    %v233 = vadd.f32 0.0, %v232
    %v234 = vpop.f32.mrb[0].mxu0
    %235 = vdwg.mxu0
    %v236 = vadd.f32 %v161, %v233
    %v237 = vxor.u32 %v236, 2147483648
    %v238 = vmul.f32 %v237, 1.442695
    %v239 = vpow.pop %v238
    %v240 = vadd.f32 %v239, 1.0
    %v241 = vrcp.pop %v240
    %v242 = vmul.f32 1.0, %v241
    %v243 = vtanh.pop %v236
    %v244 = vmul.f32 %v242, 0.0
    %246 = vrot.lane.b32.xlu0 %v243, 64
    %v247 = vpop.permute.xlu0 %246
    %v249 = vmul.f32 %v242, %v247
    %251 = vrot.lane.b32.xlu0 %v249, 96
    %v252 = vpop.permute.xlu0 %251
    %v254 = vadd.f32 %v244, %v252
    %v255 = vtanh.pop %v254
    %257 = vrot.lane.b32.xlu0 %v255, 64
    %v258 = vpop.permute.xlu0 %257
    %v260 = vmul.f32 %v242, %v258
    %262 = vrot.lane.b32.xlu0 %v260, 64
    %v263 = vpop.permute.xlu0 %262
    %vm265 = vcmask 254976
    %266 = vst.msk [vmem:[#allocation9] sm:$0x3] %vm265, %v263
    %v267 = vld [vmem:[#allocation2 + $0x2] sm:$0x3]
    %v268 = vsel %vm162, %v263, 0
    %270 = vmatprep.subr.mxu0 0.0
    %271 = vmatpush1.msra.mxu0 %v157
    %272 = vmatprep.subr.mxu0 0.0
    %273 = vmatpush1.msra.mxu0 %v158
    %274 = vmatprep.subr.mxu0 0.0
    %275 = vmatpush1.msra.mxu0 %v159
    %276 = vmatprep.subr.mxu0 0.0
    %277 = vmatpush1.msra.mxu0 %v160
    %278 = vmatprep.subr.mxu0 0.0
    %279 = vmatpush1.msra.mxu0 0.0
    %280 = vmatprep.subr.mxu0 0.0
    %281 = vmatpush1.msra.mxu0 0.0
    %282 = vmatprep.subr.mxu0 0.0
    %283 = vmatpush1.msra.mxu0 0.0
    %284 = vmatprep.subr.mxu0 0.0
    %285 = vmatpush1.msra.mxu0 0.0
    %286 = vmatprep.subr.mxu0 0.0
    %287 = vmatpush1.msra.mxu0 0.0
    %288 = vmatprep.subr.mxu0 0.0
    %289 = vmatpush1.msra.mxu0 0.0
    %290 = vmatprep.subr.mxu0 0.0
    %291 = vmatpush1.msra.mxu0 0.0
    %292 = vmatprep.subr.mxu0 0.0
    %293 = vmatpush1.msra.mxu0 0.0
    %294 = vmatprep.subr.mxu0 0.0
    %295 = vmatpush1.msra.mxu0 0.0
    %296 = vmatprep.subr.mxu0 0.0
    %297 = vmatpush1.msra.mxu0 0.0
    %298 = vmatprep.subr.mxu0 0.0
    %299 = vmatpush1.msra.mxu0 0.0
    %300 = vmatprep.subr.mxu0 0.0
    %301 = vmatpush1.msra.mxu0 0.0
    %302 = vmatprep.subr.mxu0 0.0
    %303 = vmatpush1.msra.mxu0 0.0
    %304 = vmatprep.subr.mxu0 0.0
    %305 = vmatpush1.msra.mxu0 0.0
    %306 = vmatprep.subr.mxu0 0.0
    %307 = vmatpush1.msra.mxu0 0.0
    %308 = vmatprep.subr.mxu0 0.0
    %309 = vmatpush1.msra.mxu0 0.0
    %310 = vmatprep.subr.mxu0 0.0
    %311 = vmatpush1.msra.mxu0 0.0
    %312 = vmatprep.subr.mxu0 0.0
    %313 = vmatpush1.msra.mxu0 0.0
    %314 = vmatprep.subr.mxu0 0.0
    %315 = vmatpush1.msra.mxu0 0.0
    %316 = vmatprep.subr.mxu0 0.0
    %317 = vmatpush1.msra.mxu0 0.0
    %318 = vmatprep.subr.mxu0 0.0
    %319 = vmatpush1.msra.mxu0 0.0
    %320 = vmatprep.subr.mxu0 0.0
    %321 = vmatpush1.msra.mxu0 0.0
    %322 = vmatprep.subr.mxu0 0.0
    %323 = vmatpush1.msra.mxu0 0.0
    %324 = vmatprep.subr.mxu0 0.0
    %325 = vmatpush1.msra.mxu0 0.0
    %326 = vmatprep.subr.mxu0 0.0
    %327 = vmatpush1.msra.mxu0 0.0
    %328 = vmatprep.subr.mxu0 0.0
    %329 = vmatpush1.msra.mxu0 0.0
    %330 = vmatprep.subr.mxu0 0.0
    %331 = vmatpush1.msra.mxu0 0.0
    %332 = vmatprep.subr.mxu0 0.0
    %333 = vmatpush1.msra.mxu0 0.0
    %334 = vmatprep.mubr.f32.mxu0 0.0
    %335 = vmatmul.mubr.f32.gmra.mrb[0].mxu0 %v268
    %v336 = vpop.f32.mrb[0].mxu0
    %v337 = vadd.f32 0.0, %v336
    %v338 = vpop.f32.mrb[0].mxu0
    %339 = vdwg.mxu0
    %v340 = vadd.f32 %v267, %v337
    %v341 = vxor.u32 %v340, 2147483648
    %v342 = vmul.f32 %v341, 1.442695
    %v343 = vpow.pop %v342
    %v344 = vadd.f32 %v343, 1.0
    %v345 = vrcp.pop %v344
    %v346 = vmul.f32 1.0, %v345
    %v347 = vtanh.pop %v340
    %v348 = vmul.f32 %v346, %v254
    %350 = vrot.lane.b32.xlu0 %v347, 64
    %v351 = vpop.permute.xlu0 %350
    %v353 = vmul.f32 %v346, %v351
    %355 = vrot.lane.b32.xlu0 %v353, 96
    %v356 = vpop.permute.xlu0 %355
    %v358 = vadd.f32 %v348, %v356
    %v359 = vtanh.pop %v358
    %361 = vrot.lane.b32.xlu0 %v359, 64
    %v362 = vpop.permute.xlu0 %361
    %v364 = vmul.f32 %v346, %v362
    %366 = vrot.lane.b32.xlu0 %v364, 64
    %v367 = vpop.permute.xlu0 %366
    %369 = vst.msk [vmem:[#allocation9 + $0x2] sm:$0x3] %vm265, %v367
    %v370 = vld [vmem:[#allocation2 + $0x4] sm:$0x3]
    %v371 = vsel %vm162, %v367, 0
    %373 = vmatprep.subr.mxu0 0.0
    %374 = vmatpush1.msra.mxu0 %v157
    %375 = vmatprep.subr.mxu0 0.0
    %376 = vmatpush1.msra.mxu0 %v158
    %377 = vmatprep.subr.mxu0 0.0
    %378 = vmatpush1.msra.mxu0 %v159
    %379 = vmatprep.subr.mxu0 0.0
    %380 = vmatpush1.msra.mxu0 %v160
    %381 = vmatprep.subr.mxu0 0.0
    %382 = vmatpush1.msra.mxu0 0.0
    %383 = vmatprep.subr.mxu0 0.0
    %384 = vmatpush1.msra.mxu0 0.0
    %385 = vmatprep.subr.mxu0 0.0
    %386 = vmatpush1.msra.mxu0 0.0
    %387 = vmatprep.subr.mxu0 0.0
    %388 = vmatpush1.msra.mxu0 0.0
    %389 = vmatprep.subr.mxu0 0.0
    %390 = vmatpush1.msra.mxu0 0.0
    %391 = vmatprep.subr.mxu0 0.0
    %392 = vmatpush1.msra.mxu0 0.0
    %393 = vmatprep.subr.mxu0 0.0
    %394 = vmatpush1.msra.mxu0 0.0
    %395 = vmatprep.subr.mxu0 0.0
    %396 = vmatpush1.msra.mxu0 0.0
    %397 = vmatprep.subr.mxu0 0.0
    %398 = vmatpush1.msra.mxu0 0.0
    %399 = vmatprep.subr.mxu0 0.0
    %400 = vmatpush1.msra.mxu0 0.0
    %401 = vmatprep.subr.mxu0 0.0
    %402 = vmatpush1.msra.mxu0 0.0
    %403 = vmatprep.subr.mxu0 0.0
    %404 = vmatpush1.msra.mxu0 0.0
    %405 = vmatprep.subr.mxu0 0.0
    %406 = vmatpush1.msra.mxu0 0.0
    %407 = vmatprep.subr.mxu0 0.0
    %408 = vmatpush1.msra.mxu0 0.0
    %409 = vmatprep.subr.mxu0 0.0
    %410 = vmatpush1.msra.mxu0 0.0
    %411 = vmatprep.subr.mxu0 0.0
    %412 = vmatpush1.msra.mxu0 0.0
    %413 = vmatprep.subr.mxu0 0.0
    %414 = vmatpush1.msra.mxu0 0.0
    %415 = vmatprep.subr.mxu0 0.0
    %416 = vmatpush1.msra.mxu0 0.0
    %417 = vmatprep.subr.mxu0 0.0
    %418 = vmatpush1.msra.mxu0 0.0
    %419 = vmatprep.subr.mxu0 0.0
    %420 = vmatpush1.msra.mxu0 0.0
    %421 = vmatprep.subr.mxu0 0.0
    %422 = vmatpush1.msra.mxu0 0.0
    %423 = vmatprep.subr.mxu0 0.0
    %424 = vmatpush1.msra.mxu0 0.0
    %425 = vmatprep.subr.mxu0 0.0
    %426 = vmatpush1.msra.mxu0 0.0
    %427 = vmatprep.subr.mxu0 0.0
    %428 = vmatpush1.msra.mxu0 0.0
    %429 = vmatprep.subr.mxu0 0.0
    %430 = vmatpush1.msra.mxu0 0.0
    %431 = vmatprep.subr.mxu0 0.0
    %432 = vmatpush1.msra.mxu0 0.0
    %433 = vmatprep.subr.mxu0 0.0
    %434 = vmatpush1.msra.mxu0 0.0
    %435 = vmatprep.subr.mxu0 0.0
    %436 = vmatpush1.msra.mxu0 0.0
    %437 = vmatprep.mubr.f32.mxu0 0.0
    %438 = vmatmul.mubr.f32.gmra.mrb[0].mxu0 %v371
    %v439 = vpop.f32.mrb[0].mxu0
    %v440 = vadd.f32 0.0, %v439
    %v441 = vpop.f32.mrb[0].mxu0
    %442 = vdwg.mxu0
    %v443 = vadd.f32 %v370, %v440
    %v444 = vxor.u32 %v443, 2147483648
    %v445 = vmul.f32 %v444, 1.442695
    %v446 = vpow.pop %v445
    %v447 = vadd.f32 %v446, 1.0
    %v448 = vrcp.pop %v447
    %v449 = vmul.f32 1.0, %v448
    %v450 = vtanh.pop %v443
    %v451 = vmul.f32 %v449, %v358
    %453 = vrot.lane.b32.xlu0 %v450, 64
    %v454 = vpop.permute.xlu0 %453
    %v456 = vmul.f32 %v449, %v454
    %458 = vrot.lane.b32.xlu0 %v456, 96
    %v459 = vpop.permute.xlu0 %458
    %v461 = vadd.f32 %v451, %v459
    %v462 = vtanh.pop %v461
    %464 = vrot.lane.b32.xlu0 %v462, 64
    %v465 = vpop.permute.xlu0 %464
    %v467 = vmul.f32 %v449, %v465
    %469 = vrot.lane.b32.xlu0 %v467, 64
    %v470 = vpop.permute.xlu0 %469
    %472 = vst.msk [vmem:[#allocation9 + $0x4] sm:$0x3] %vm265, %v470
    %v473 = vld [vmem:[#allocation2 + $0x6] sm:$0x3]
    %v474 = vsel %vm162, %v470, 0
    %476 = vmatprep.subr.mxu0 0.0
    %477 = vmatpush1.msra.mxu0 %v157
    %478 = vmatprep.subr.mxu0 0.0
    %479 = vmatpush1.msra.mxu0 %v158
    %480 = vmatprep.subr.mxu0 0.0
    %481 = vmatpush1.msra.mxu0 %v159
    %482 = vmatprep.subr.mxu0 0.0
    %483 = vmatpush1.msra.mxu0 %v160
    %484 = vmatprep.subr.mxu0 0.0
    %485 = vmatpush1.msra.mxu0 0.0
    %486 = vmatprep.subr.mxu0 0.0
    %487 = vmatpush1.msra.mxu0 0.0
    %488 = vmatprep.subr.mxu0 0.0
    %489 = vmatpush1.msra.mxu0 0.0
    %490 = vmatprep.subr.mxu0 0.0
    %491 = vmatpush1.msra.mxu0 0.0
    %492 = vmatprep.subr.mxu0 0.0
    %493 = vmatpush1.msra.mxu0 0.0
    %494 = vmatprep.subr.mxu0 0.0
    %495 = vmatpush1.msra.mxu0 0.0
    %496 = vmatprep.subr.mxu0 0.0
    %497 = vmatpush1.msra.mxu0 0.0
    %498 = vmatprep.subr.mxu0 0.0
    %499 = vmatpush1.msra.mxu0 0.0
    %500 = vmatprep.subr.mxu0 0.0
    %501 = vmatpush1.msra.mxu0 0.0
    %502 = vmatprep.subr.mxu0 0.0
    %503 = vmatpush1.msra.mxu0 0.0
    %504 = vmatprep.subr.mxu0 0.0
    %505 = vmatpush1.msra.mxu0 0.0
    %506 = vmatprep.subr.mxu0 0.0
    %507 = vmatpush1.msra.mxu0 0.0
    %508 = vmatprep.subr.mxu0 0.0
    %509 = vmatpush1.msra.mxu0 0.0
    %510 = vmatprep.subr.mxu0 0.0
    %511 = vmatpush1.msra.mxu0 0.0
    %512 = vmatprep.subr.mxu0 0.0
    %513 = vmatpush1.msra.mxu0 0.0
    %514 = vmatprep.subr.mxu0 0.0
    %515 = vmatpush1.msra.mxu0 0.0
    %516 = vmatprep.subr.mxu0 0.0
    %517 = vmatpush1.msra.mxu0 0.0
    %518 = vmatprep.subr.mxu0 0.0
    %519 = vmatpush1.msra.mxu0 0.0
    %520 = vmatprep.subr.mxu0 0.0
    %521 = vmatpush1.msra.mxu0 0.0
    %522 = vmatprep.subr.mxu0 0.0
    %523 = vmatpush1.msra.mxu0 0.0
    %524 = vmatprep.subr.mxu0 0.0
    %525 = vmatpush1.msra.mxu0 0.0
    %526 = vmatprep.subr.mxu0 0.0
    %527 = vmatpush1.msra.mxu0 0.0
    %528 = vmatprep.subr.mxu0 0.0
    %529 = vmatpush1.msra.mxu0 0.0
    %530 = vmatprep.subr.mxu0 0.0
    %531 = vmatpush1.msra.mxu0 0.0
    %532 = vmatprep.subr.mxu0 0.0
    %533 = vmatpush1.msra.mxu0 0.0
    %534 = vmatprep.subr.mxu0 0.0
    %535 = vmatpush1.msra.mxu0 0.0
    %536 = vmatprep.subr.mxu0 0.0
    %537 = vmatpush1.msra.mxu0 0.0
    %538 = vmatprep.subr.mxu0 0.0
    %539 = vmatpush1.msra.mxu0 0.0
    %540 = vmatprep.mubr.f32.mxu0 0.0
    %541 = vmatmul.mubr.f32.gmra.mrb[0].mxu0 %v474
    %v542 = vpop.f32.mrb[0].mxu0
    %v543 = vadd.f32 0.0, %v542
    %v544 = vpop.f32.mrb[0].mxu0
    %545 = vdwg.mxu0
    %v546 = vadd.f32 %v473, %v543
    %v547 = vxor.u32 %v546, 2147483648
    %v548 = vmul.f32 %v547, 1.442695
    %v549 = vpow.pop %v548
    %v550 = vadd.f32 %v549, 1.0
    %v551 = vrcp.pop %v550
    %v552 = vmul.f32 1.0, %v551
    %v553 = vtanh.pop %v546
    %v554 = vmul.f32 %v552, %v461
    %556 = vrot.lane.b32.xlu0 %v553, 64
    %v557 = vpop.permute.xlu0 %556
    %v559 = vmul.f32 %v552, %v557
    %561 = vrot.lane.b32.xlu0 %v559, 96
    %v562 = vpop.permute.xlu0 %561
    %v564 = vadd.f32 %v554, %v562
    %v565 = vtanh.pop %v564
    %567 = vrot.lane.b32.xlu0 %v565, 64
    %v568 = vpop.permute.xlu0 %567
    %v570 = vmul.f32 %v552, %v568
    %572 = vrot.lane.b32.xlu0 %v570, 64
    %v573 = vpop.permute.xlu0 %572
    %575 = vst.msk [vmem:[#allocation9 + $0x6] sm:$0x3] %vm265, %v573
    %v576 = vld [vmem:[#allocation2 + $0x8] sm:$0x3]
    %v577 = vsel %vm162, %v573, 0
    %579 = vmatprep.subr.mxu0 0.0
    %580 = vmatpush1.msra.mxu0 %v157
    %581 = vmatprep.subr.mxu0 0.0
    %582 = vmatpush1.msra.mxu0 %v158
    %583 = vmatprep.subr.mxu0 0.0
    %584 = vmatpush1.msra.mxu0 %v159
    %585 = vmatprep.subr.mxu0 0.0
    %586 = vmatpush1.msra.mxu0 %v160
    %587 = vmatprep.subr.mxu0 0.0
    %588 = vmatpush1.msra.mxu0 0.0
    %589 = vmatprep.subr.mxu0 0.0
    %590 = vmatpush1.msra.mxu0 0.0
    %591 = vmatprep.subr.mxu0 0.0
    %592 = vmatpush1.msra.mxu0 0.0
    %593 = vmatprep.subr.mxu0 0.0
    %594 = vmatpush1.msra.mxu0 0.0
    %595 = vmatprep.subr.mxu0 0.0
    %596 = vmatpush1.msra.mxu0 0.0
    %597 = vmatprep.subr.mxu0 0.0
    %598 = vmatpush1.msra.mxu0 0.0
    %599 = vmatprep.subr.mxu0 0.0
    %600 = vmatpush1.msra.mxu0 0.0
    %601 = vmatprep.subr.mxu0 0.0
    %602 = vmatpush1.msra.mxu0 0.0
    %603 = vmatprep.subr.mxu0 0.0
    %604 = vmatpush1.msra.mxu0 0.0
    %605 = vmatprep.subr.mxu0 0.0
    %606 = vmatpush1.msra.mxu0 0.0
    %607 = vmatprep.subr.mxu0 0.0
    %608 = vmatpush1.msra.mxu0 0.0
    %609 = vmatprep.subr.mxu0 0.0
    %610 = vmatpush1.msra.mxu0 0.0
    %611 = vmatprep.subr.mxu0 0.0
    %612 = vmatpush1.msra.mxu0 0.0
    %613 = vmatprep.subr.mxu0 0.0
    %614 = vmatpush1.msra.mxu0 0.0
    %615 = vmatprep.subr.mxu0 0.0
    %616 = vmatpush1.msra.mxu0 0.0
    %617 = vmatprep.subr.mxu0 0.0
    %618 = vmatpush1.msra.mxu0 0.0
    %619 = vmatprep.subr.mxu0 0.0
    %620 = vmatpush1.msra.mxu0 0.0
    %621 = vmatprep.subr.mxu0 0.0
    %622 = vmatpush1.msra.mxu0 0.0
    %623 = vmatprep.subr.mxu0 0.0
    %624 = vmatpush1.msra.mxu0 0.0
    %625 = vmatprep.subr.mxu0 0.0
    %626 = vmatpush1.msra.mxu0 0.0
    %627 = vmatprep.subr.mxu0 0.0
    %628 = vmatpush1.msra.mxu0 0.0
    %629 = vmatprep.subr.mxu0 0.0
    %630 = vmatpush1.msra.mxu0 0.0
    %631 = vmatprep.subr.mxu0 0.0
    %632 = vmatpush1.msra.mxu0 0.0
    %633 = vmatprep.subr.mxu0 0.0
    %634 = vmatpush1.msra.mxu0 0.0
    %635 = vmatprep.subr.mxu0 0.0
    %636 = vmatpush1.msra.mxu0 0.0
    %637 = vmatprep.subr.mxu0 0.0
    %638 = vmatpush1.msra.mxu0 0.0
    %639 = vmatprep.subr.mxu0 0.0
    %640 = vmatpush1.msra.mxu0 0.0
    %641 = vmatprep.subr.mxu0 0.0
    %642 = vmatpush1.msra.mxu0 0.0
    %643 = vmatprep.mubr.f32.mxu0 0.0
    %644 = vmatmul.mubr.f32.gmra.mrb[0].mxu0 %v577
    %v645 = vpop.f32.mrb[0].mxu0
    %v646 = vadd.f32 0.0, %v645
    %v647 = vpop.f32.mrb[0].mxu0
    %648 = vdwg.mxu0
    %v649 = vadd.f32 %v576, %v646
    %v650 = vxor.u32 %v649, 2147483648
    %v651 = vmul.f32 %v650, 1.442695
    %v652 = vpow.pop %v651
    %v653 = vadd.f32 %v652, 1.0
    %v654 = vrcp.pop %v653
    %v655 = vmul.f32 1.0, %v654
    %v656 = vtanh.pop %v649
    %v657 = vmul.f32 %v655, %v564
    %659 = vrot.lane.b32.xlu0 %v656, 64
    %v660 = vpop.permute.xlu0 %659
    %v662 = vmul.f32 %v655, %v660
    %664 = vrot.lane.b32.xlu0 %v662, 96
    %v665 = vpop.permute.xlu0 %664
    %v667 = vadd.f32 %v657, %v665
    %v668 = vtanh.pop %v667
    %670 = vrot.lane.b32.xlu0 %v668, 64
    %v671 = vpop.permute.xlu0 %670
    %v673 = vmul.f32 %v655, %v671
    %675 = vrot.lane.b32.xlu0 %v673, 64
    %v676 = vpop.permute.xlu0 %675
    %678 = vst.msk [vmem:[#allocation9 + $0x8] sm:$0x3] %vm265, %v676
    %v679 = vld [vmem:[#allocation2 + $0xa] sm:$0x3]
    %v680 = vsel %vm162, %v676, 0
    %682 = vmatprep.subr.mxu0 0.0
    %683 = vmatpush1.msra.mxu0 %v157
    %684 = vmatprep.subr.mxu0 0.0
    %685 = vmatpush1.msra.mxu0 %v158
    %686 = vmatprep.subr.mxu0 0.0
    %687 = vmatpush1.msra.mxu0 %v159
    %688 = vmatprep.subr.mxu0 0.0
    %689 = vmatpush1.msra.mxu0 %v160
    %690 = vmatprep.subr.mxu0 0.0
    %691 = vmatpush1.msra.mxu0 0.0
    %692 = vmatprep.subr.mxu0 0.0
    %693 = vmatpush1.msra.mxu0 0.0
    %694 = vmatprep.subr.mxu0 0.0
    %695 = vmatpush1.msra.mxu0 0.0
    %696 = vmatprep.subr.mxu0 0.0
    %697 = vmatpush1.msra.mxu0 0.0
    %698 = vmatprep.subr.mxu0 0.0
    %699 = vmatpush1.msra.mxu0 0.0
    %700 = vmatprep.subr.mxu0 0.0
    %701 = vmatpush1.msra.mxu0 0.0
    %702 = vmatprep.subr.mxu0 0.0
    %703 = vmatpush1.msra.mxu0 0.0
    %704 = vmatprep.subr.mxu0 0.0
    %705 = vmatpush1.msra.mxu0 0.0
    %706 = vmatprep.subr.mxu0 0.0
    %707 = vmatpush1.msra.mxu0 0.0
    %708 = vmatprep.subr.mxu0 0.0
    %709 = vmatpush1.msra.mxu0 0.0
    %710 = vmatprep.subr.mxu0 0.0
    %711 = vmatpush1.msra.mxu0 0.0
    %712 = vmatprep.subr.mxu0 0.0
    %713 = vmatpush1.msra.mxu0 0.0
    %714 = vmatprep.subr.mxu0 0.0
    %715 = vmatpush1.msra.mxu0 0.0
    %716 = vmatprep.subr.mxu0 0.0
    %717 = vmatpush1.msra.mxu0 0.0
    %718 = vmatprep.subr.mxu0 0.0
    %719 = vmatpush1.msra.mxu0 0.0
    %720 = vmatprep.subr.mxu0 0.0
    %721 = vmatpush1.msra.mxu0 0.0
    %722 = vmatprep.subr.mxu0 0.0
    %723 = vmatpush1.msra.mxu0 0.0
    %724 = vmatprep.subr.mxu0 0.0
    %725 = vmatpush1.msra.mxu0 0.0
    %726 = vmatprep.subr.mxu0 0.0
    %727 = vmatpush1.msra.mxu0 0.0
    %728 = vmatprep.subr.mxu0 0.0
    %729 = vmatpush1.msra.mxu0 0.0
    %730 = vmatprep.subr.mxu0 0.0
    %731 = vmatpush1.msra.mxu0 0.0
    %732 = vmatprep.subr.mxu0 0.0
    %733 = vmatpush1.msra.mxu0 0.0
    %734 = vmatprep.subr.mxu0 0.0
    %735 = vmatpush1.msra.mxu0 0.0
    %736 = vmatprep.subr.mxu0 0.0
    %737 = vmatpush1.msra.mxu0 0.0
    %738 = vmatprep.subr.mxu0 0.0
    %739 = vmatpush1.msra.mxu0 0.0
    %740 = vmatprep.subr.mxu0 0.0
    %741 = vmatpush1.msra.mxu0 0.0
    %742 = vmatprep.subr.mxu0 0.0
    %743 = vmatpush1.msra.mxu0 0.0
    %744 = vmatprep.subr.mxu0 0.0
    %745 = vmatpush1.msra.mxu0 0.0
    %746 = vmatprep.mubr.f32.mxu0 0.0
    %747 = vmatmul.mubr.f32.gmra.mrb[0].mxu0 %v680
    %v748 = vpop.f32.mrb[0].mxu0
    %v749 = vadd.f32 0.0, %v748
    %v750 = vpop.f32.mrb[0].mxu0
    %751 = vdwg.mxu0
    %v752 = vadd.f32 %v679, %v749
    %v753 = vxor.u32 %v752, 2147483648
    %v754 = vmul.f32 %v753, 1.442695
    %v755 = vpow.pop %v754
    %v756 = vadd.f32 %v755, 1.0
    %v757 = vrcp.pop %v756
    %v758 = vmul.f32 1.0, %v757
    %v759 = vtanh.pop %v752
    %v760 = vmul.f32 %v758, %v667
    %762 = vrot.lane.b32.xlu0 %v759, 64
    %v763 = vpop.permute.xlu0 %762
    %v765 = vmul.f32 %v758, %v763
    %767 = vrot.lane.b32.xlu0 %v765, 96
    %v768 = vpop.permute.xlu0 %767
    %v770 = vadd.f32 %v760, %v768
    %v771 = vtanh.pop %v770
    %773 = vrot.lane.b32.xlu0 %v771, 64
    %v774 = vpop.permute.xlu0 %773
    %v776 = vmul.f32 %v758, %v774
    %778 = vrot.lane.b32.xlu0 %v776, 64
    %v779 = vpop.permute.xlu0 %778
    %781 = vst.msk [vmem:[#allocation9 + $0xa] sm:$0x3] %vm265, %v779
    %v782 = vld [vmem:[#allocation2 + $0xc] sm:$0x3]
    %v783 = vsel %vm162, %v779, 0
    %785 = vmatprep.subr.mxu0 0.0
    %786 = vmatpush1.msra.mxu0 %v157
    %787 = vmatprep.subr.mxu0 0.0
    %788 = vmatpush1.msra.mxu0 %v158
    %789 = vmatprep.subr.mxu0 0.0
    %790 = vmatpush1.msra.mxu0 %v159
    %791 = vmatprep.subr.mxu0 0.0
    %792 = vmatpush1.msra.mxu0 %v160
    %793 = vmatprep.subr.mxu0 0.0
    %794 = vmatpush1.msra.mxu0 0.0
    %795 = vmatprep.subr.mxu0 0.0
    %796 = vmatpush1.msra.mxu0 0.0
    %797 = vmatprep.subr.mxu0 0.0
    %798 = vmatpush1.msra.mxu0 0.0
    %799 = vmatprep.subr.mxu0 0.0
    %800 = vmatpush1.msra.mxu0 0.0
    %801 = vmatprep.subr.mxu0 0.0
    %802 = vmatpush1.msra.mxu0 0.0
    %803 = vmatprep.subr.mxu0 0.0
    %804 = vmatpush1.msra.mxu0 0.0
    %805 = vmatprep.subr.mxu0 0.0
    %806 = vmatpush1.msra.mxu0 0.0
    %807 = vmatprep.subr.mxu0 0.0
    %808 = vmatpush1.msra.mxu0 0.0
    %809 = vmatprep.subr.mxu0 0.0
    %810 = vmatpush1.msra.mxu0 0.0
    %811 = vmatprep.subr.mxu0 0.0
    %812 = vmatpush1.msra.mxu0 0.0
    %813 = vmatprep.subr.mxu0 0.0
    %814 = vmatpush1.msra.mxu0 0.0
    %815 = vmatprep.subr.mxu0 0.0
    %816 = vmatpush1.msra.mxu0 0.0
    %817 = vmatprep.subr.mxu0 0.0
    %818 = vmatpush1.msra.mxu0 0.0
    %819 = vmatprep.subr.mxu0 0.0
    %820 = vmatpush1.msra.mxu0 0.0
    %821 = vmatprep.subr.mxu0 0.0
    %822 = vmatpush1.msra.mxu0 0.0
    %823 = vmatprep.subr.mxu0 0.0
    %824 = vmatpush1.msra.mxu0 0.0
    %825 = vmatprep.subr.mxu0 0.0
    %826 = vmatpush1.msra.mxu0 0.0
    %827 = vmatprep.subr.mxu0 0.0
    %828 = vmatpush1.msra.mxu0 0.0
    %829 = vmatprep.subr.mxu0 0.0
    %830 = vmatpush1.msra.mxu0 0.0
    %831 = vmatprep.subr.mxu0 0.0
    %832 = vmatpush1.msra.mxu0 0.0
    %833 = vmatprep.subr.mxu0 0.0
    %834 = vmatpush1.msra.mxu0 0.0
    %835 = vmatprep.subr.mxu0 0.0
    %836 = vmatpush1.msra.mxu0 0.0
    %837 = vmatprep.subr.mxu0 0.0
    %838 = vmatpush1.msra.mxu0 0.0
    %839 = vmatprep.subr.mxu0 0.0
    %840 = vmatpush1.msra.mxu0 0.0
    %841 = vmatprep.subr.mxu0 0.0
    %842 = vmatpush1.msra.mxu0 0.0
    %843 = vmatprep.subr.mxu0 0.0
    %844 = vmatpush1.msra.mxu0 0.0
    %845 = vmatprep.subr.mxu0 0.0
    %846 = vmatpush1.msra.mxu0 0.0
    %847 = vmatprep.subr.mxu0 0.0
    %848 = vmatpush1.msra.mxu0 0.0
    %849 = vmatprep.mubr.f32.mxu0 0.0
    %850 = vmatmul.mubr.f32.gmra.mrb[0].mxu0 %v783
    %v851 = vpop.f32.mrb[0].mxu0
    %v852 = vadd.f32 0.0, %v851
    %v853 = vpop.f32.mrb[0].mxu0
    %854 = vdwg.mxu0
    %v855 = vadd.f32 %v782, %v852
    %v856 = vxor.u32 %v855, 2147483648
    %v857 = vmul.f32 %v856, 1.442695
    %v858 = vpow.pop %v857
    %v859 = vadd.f32 %v858, 1.0
    %v860 = vrcp.pop %v859
    %v861 = vmul.f32 1.0, %v860
    %v862 = vtanh.pop %v855
    %v863 = vmul.f32 %v861, %v770
    %865 = vrot.lane.b32.xlu0 %v862, 64
    %v866 = vpop.permute.xlu0 %865
    %v868 = vmul.f32 %v861, %v866
    %870 = vrot.lane.b32.xlu0 %v868, 96
    %v871 = vpop.permute.xlu0 %870
    %v873 = vadd.f32 %v863, %v871
    %v874 = vtanh.pop %v873
    %876 = vrot.lane.b32.xlu0 %v874, 64
    %v877 = vpop.permute.xlu0 %876
    %v879 = vmul.f32 %v861, %v877
    %881 = vrot.lane.b32.xlu0 %v879, 64
    %v882 = vpop.permute.xlu0 %881
    %884 = vst.msk [vmem:[#allocation9 + $0xc] sm:$0x3] %vm265, %v882
    %v885 = vld [vmem:[#allocation2 + $0xe] sm:$0x3]
    %v886 = vsel %vm162, %v882, 0
    %888 = vmatprep.subr.mxu0 0.0
    %889 = vmatpush1.msra.mxu0 %v157
    %890 = vmatprep.subr.mxu0 0.0
    %891 = vmatpush1.msra.mxu0 %v158
    %892 = vmatprep.subr.mxu0 0.0
    %893 = vmatpush1.msra.mxu0 %v159
    %894 = vmatprep.subr.mxu0 0.0
    %895 = vmatpush1.msra.mxu0 %v160
    %896 = vmatprep.subr.mxu0 0.0
    %897 = vmatpush1.msra.mxu0 0.0
    %898 = vmatprep.subr.mxu0 0.0
    %899 = vmatpush1.msra.mxu0 0.0
    %900 = vmatprep.subr.mxu0 0.0
    %901 = vmatpush1.msra.mxu0 0.0
    %902 = vmatprep.subr.mxu0 0.0
    %903 = vmatpush1.msra.mxu0 0.0
    %904 = vmatprep.subr.mxu0 0.0
    %905 = vmatpush1.msra.mxu0 0.0
    %906 = vmatprep.subr.mxu0 0.0
    %907 = vmatpush1.msra.mxu0 0.0
    %908 = vmatprep.subr.mxu0 0.0
    %909 = vmatpush1.msra.mxu0 0.0
    %910 = vmatprep.subr.mxu0 0.0
    %911 = vmatpush1.msra.mxu0 0.0
    %912 = vmatprep.subr.mxu0 0.0
    %913 = vmatpush1.msra.mxu0 0.0
    %914 = vmatprep.subr.mxu0 0.0
    %915 = vmatpush1.msra.mxu0 0.0
    %916 = vmatprep.subr.mxu0 0.0
    %917 = vmatpush1.msra.mxu0 0.0
    %918 = vmatprep.subr.mxu0 0.0
    %919 = vmatpush1.msra.mxu0 0.0
    %920 = vmatprep.subr.mxu0 0.0
    %921 = vmatpush1.msra.mxu0 0.0
    %922 = vmatprep.subr.mxu0 0.0
    %923 = vmatpush1.msra.mxu0 0.0
    %924 = vmatprep.subr.mxu0 0.0
    %925 = vmatpush1.msra.mxu0 0.0
    %926 = vmatprep.subr.mxu0 0.0
    %927 = vmatpush1.msra.mxu0 0.0
    %928 = vmatprep.subr.mxu0 0.0
    %929 = vmatpush1.msra.mxu0 0.0
    %930 = vmatprep.subr.mxu0 0.0
    %931 = vmatpush1.msra.mxu0 0.0
    %932 = vmatprep.subr.mxu0 0.0
    %933 = vmatpush1.msra.mxu0 0.0
    %934 = vmatprep.subr.mxu0 0.0
    %935 = vmatpush1.msra.mxu0 0.0
    %936 = vmatprep.subr.mxu0 0.0
    %937 = vmatpush1.msra.mxu0 0.0
    %938 = vmatprep.subr.mxu0 0.0
    %939 = vmatpush1.msra.mxu0 0.0
    %940 = vmatprep.subr.mxu0 0.0
    %941 = vmatpush1.msra.mxu0 0.0
    %942 = vmatprep.subr.mxu0 0.0
    %943 = vmatpush1.msra.mxu0 0.0
    %944 = vmatprep.subr.mxu0 0.0
    %945 = vmatpush1.msra.mxu0 0.0
    %946 = vmatprep.subr.mxu0 0.0
    %947 = vmatpush1.msra.mxu0 0.0
    %948 = vmatprep.subr.mxu0 0.0
    %949 = vmatpush1.msra.mxu0 0.0
    %950 = vmatprep.subr.mxu0 0.0
    %951 = vmatpush1.msra.mxu0 0.0
    %952 = vmatprep.mubr.f32.mxu0 0.0
    %953 = vmatmul.mubr.f32.gmra.mrb[0].mxu0 %v886
    %v954 = vpop.f32.mrb[0].mxu0
    %v955 = vadd.f32 0.0, %v954
    %v956 = vpop.f32.mrb[0].mxu0
    %957 = vdwg.mxu0
    %v958 = vadd.f32 %v885, %v955
    %v959 = vxor.u32 %v958, 2147483648
    %v960 = vmul.f32 %v959, 1.442695
    %v961 = vpow.pop %v960
    %v962 = vadd.f32 %v961, 1.0
    %v963 = vrcp.pop %v962
    %v964 = vmul.f32 1.0, %v963
    %v965 = vtanh.pop %v958
    %v966 = vmul.f32 %v964, %v873
    %968 = vrot.lane.b32.xlu0 %v965, 64
    %v969 = vpop.permute.xlu0 %968
    %v971 = vmul.f32 %v964, %v969
    %973 = vrot.lane.b32.xlu0 %v971, 96
    %v974 = vpop.permute.xlu0 %973
    %v976 = vadd.f32 %v966, %v974
    %v977 = vtanh.pop %v976
    %979 = vrot.lane.b32.xlu0 %v977, 64
    %v980 = vpop.permute.xlu0 %979
    %v982 = vmul.f32 %v964, %v980
    %984 = vrot.lane.b32.xlu0 %v982, 64
    %v985 = vpop.permute.xlu0 %984
    %987 = vst.msk [vmem:[#allocation9 + $0xe] sm:$0x3] %vm265, %v985
    %988 = vst.msk [vmem:[#allocation10] sm:$0x3] %vm265, %v985
    // Predicated region
    $region30: #{tpu_custom_call.1} parent=1 // pred_check
      _
    $region31: #{tpu_custom_call.1} parent=1 // pred_check_branch
      %990 = sbr.rel (0) target = $region33
    $region32: #{tpu_custom_call.1} parent=1 // pred_region
      %s992 = ssub.s32 256, 256
      %993 = vsyncadd [#allocation5], %s992
      %s994 = sshll.u32 [#allocation9], 4
      %s995 = int_to_ptr.vmem [resolvable:$true] %s994
      %1000 = dma.vmem_to_hbm [thread:$0]  %s995, 256, %s4, [#allocation5], 128, 128, 8
    $region33: #{tpu_custom_call.1} parent=1 // pred_fallthru
      _
    // Predicated region
    $region34: #{tpu_custom_call.1} parent=1 // pred_check
      _
    $region35: #{tpu_custom_call.1} parent=1 // pred_check_branch
      %1002 = sbr.rel (0) target = $region37
    $region36: #{tpu_custom_call.1} parent=1 // pred_region
      %s1004 = ssub.s32 32, 32
      %1005 = vsyncadd [#allocation11], %s1004
      %s1007 = sshll.u32 [#allocation10], 4
      %s1008 = int_to_ptr.vmem [resolvable:$true] %s1007
      %1010 = dma.vmem_to_hbm [thread:$0]  %s1008, 32, %s5, [#allocation11]
    $region37: #{tpu_custom_call.1} parent=1 // pred_fallthru
      _
    // Predicated region
    $region38: #{tpu_custom_call.1} parent=1 // pred_check
      _
    $region39: #{tpu_custom_call.1} parent=1 // pred_check_branch
      %1012 = sbr.rel (0) target = $region41
    $region40: #{tpu_custom_call.1} parent=1 // pred_region
      %1013 = dma.done [#allocation5], 256
    $region41: #{tpu_custom_call.1} parent=1 // pred_fallthru
      _
    // Predicated region
    $region42: #{tpu_custom_call.1} parent=1 // pred_check
      _
    $region43: #{tpu_custom_call.1} parent=1 // pred_check_branch
      %1015 = sbr.rel (0) target = $region45
    $region44: #{tpu_custom_call.1} parent=1 // pred_region
      %1016 = dma.done [#allocation11], 32
    $region45: #{tpu_custom_call.1} parent=1 // pred_fallthru
      _
    %1017 = vsyncpa [#allocation4], 1
    %1018 = vsyncpa [#allocation7], 1
    %1019 = vsyncpa [#allocation5], 1
    %1020 = vsyncpa [#allocation11], 1

</llo_original>
